<compile_context>
chip_gen: v5e
topology: v5e:2x2
jax: 0.10.0
libtpu: 0.0.40
codegen_flags: <defaults>
</compile_context>

<pallas_src>
import jax
import jax.numpy as jnp
from jax.experimental import pallas as pl
from jax.experimental.pallas import tpu as pltpu

# TODO(synk): PyTorch .half() is float16; TPU's native half type is bfloat16, which
# we use for storage (all matmul accumulation and elementwise math is float32).
HALF = jnp.bfloat16
LANE = 128  # TPU lane width; last dims are padded to multiples of this.


def _round_up(x, m):
    return (x + m - 1) // m * m


def _mlp_kernel(x_ref, w1_ref, b1_ref, w2_ref, b2_ref, o_ref):
    # x: [tm, D_in] bf16, w1: [D_in, H] bf16, b1: [1, H] f32,
    # w2: [H, D_out] bf16, b2: [1, D_out] f32, o: [tm, D_out] bf16.
    x = x_ref[...]
    # First linear on the MXU with f32 accumulation; bias + ReLU kept in f32
    # (native fast path on v5e which has no bf16 VPU).
    h = jnp.dot(x, w1_ref[...], preferred_element_type=jnp.float32)
    h = jnp.maximum(h + b1_ref[...], 0.0)
    # Intermediate is rounded to bf16 once to feed the second MXU pass (the pure-JAX
    # reference below does the same rounding).
    h = h.astype(x.dtype)
    o = jnp.dot(h, w2_ref[...], preferred_element_type=jnp.float32)
    o = o + b2_ref[...]
    o_ref[...] = o.astype(o_ref.dtype)


def deepspeed_engine_forward(x, w1, b1, w2, b2, *, tm=256):
    """Mirrors DeepSpeedEngine.forward: run the (half-precision) wrapped module.

    Accepts arbitrary logical shapes; pads feature dims to multiples of 128 lanes and
    the batch to a multiple of the batch tile, then slices the logical result back out.
    """
    B, D_in = x.shape
    H = w1.shape[1]
    D_out = w2.shape[1]

    # Lane-dense padding (multiple of 128 lanes) and batch tiling.
    d_in_p = _round_up(D_in, LANE)
    h_p = _round_up(H, LANE)
    d_out_p = _round_up(D_out, LANE)
    tm_eff = min(tm, _round_up(B, 8))      # small batches: one tile, >=8 sublanes
    b_p = _round_up(B, tm_eff)

    # Zero-padding is inert for the matmuls; padded rows/cols are sliced off below.
    xp = jnp.pad(x, ((0, b_p - B), (0, d_in_p - D_in)))
    w1p = jnp.pad(w1, ((0, d_in_p - D_in), (0, h_p - H)))
    w2p = jnp.pad(w2, ((0, h_p - H), (0, d_out_p - D_out)))
    # Pre-cast biases to f32 once here (not per batch tile inside the kernel).
    b1p = jnp.pad(b1.astype(jnp.float32), ((0, 0), (0, h_p - H)))
    b2p = jnp.pad(b2.astype(jnp.float32), ((0, 0), (0, d_out_p - D_out)))

    grid = (b_p // tm_eff,)

    out_p = pl.pallas_call(
        _mlp_kernel,
        out_shape=jax.ShapeDtypeStruct((b_p, d_out_p), HALF),
        grid=grid,
        in_specs=[
            # Activations: tiled over the batch grid axis.
            pl.BlockSpec((tm_eff, d_in_p), lambda i: (i, 0)),
            # Weights/biases: constant index_map -> fetched once, resident in VMEM
            # across all batch tiles.
            pl.BlockSpec((d_in_p, h_p), lambda i: (0, 0)),
            pl.BlockSpec((1, h_p), lambda i: (0, 0)),
            pl.BlockSpec((h_p, d_out_p), lambda i: (0, 0)),
            pl.BlockSpec((1, d_out_p), lambda i: (0, 0)),
        ],
        out_specs=pl.BlockSpec((tm_eff, d_out_p), lambda i: (i, 0)),
        compiler_params=pltpu.CompilerParams(
            # Batch tiles are independent: shard across v7x's 2 TensorCores.
            dimension_semantics=("parallel",),
            # Explicit budget with headroom under v7x's 64 MiB physical VMEM
            # (resident weights + double-buffered x/o tiles here are ~1 MiB).
            vmem_limit_bytes=32 * 1024 * 1024,
        ),
    )(xp, w1p, b1p, w2p, b2p)

    return out_p[:B, :D_out]


def _init_params(key, d_in, hidden, d_out):
    k1, k2, k3, k4 = jax.random.split(key, 4)
    w1 = (jax.random.normal(k1, (d_in, hidden), jnp.float32) / jnp.sqrt(d_in)).astype(HALF)
    b1 = (jax.random.normal(k2, (1, hidden), jnp.float32) * 0.01).astype(HALF)
    w2 = (jax.random.normal(k3, (hidden, d_out), jnp.float32) / jnp.sqrt(hidden)).astype(HALF)
    b2 = (jax.random.normal(k4, (1, d_out), jnp.float32) * 0.01).astype(HALF)
    return w1, b1, w2, b2


if __name__ == "__main__":
    key = jax.random.PRNGKey(0)
    kx, kp = jax.random.split(key)

    # MXU/lane-friendly sizes: feature dims multiples of 128, hidden = 256 (fills the
    # v6e/v7x 256-deep MXU contraction), batch gridded into 256-row tiles.
    B, D_IN, HIDDEN, D_OUT = 512, 128, 256, 128
    TM = 256

    x = jax.random.normal(kx, (B, D_IN), jnp.float32).astype(HALF)
    w1, b1, w2, b2 = _init_params(kp, D_IN, HIDDEN, D_OUT)

    out = deepspeed_engine_forward(x, w1, b1, w2, b2, tm=TM)
    out = jax.block_until_ready(out)

    # Pure-JAX reference of the same math (bf16 inputs, f32 accumulation, intermediate
    # rounded to bf16 before the second matmul — identical rounding to the kernel).
    h_ref = jnp.maximum(
        jnp.dot(x, w1, preferred_element_type=jnp.float32) + b1.astype(jnp.float32), 0.0
    ).astype(HALF)
    o_ref = (
        jnp.dot(h_ref, w2, preferred_element_type=jnp.float32) + b2.astype(jnp.float32)
    ).astype(HALF)

    assert out.shape == (B, D_OUT) and out.dtype == HALF
    assert jnp.allclose(out.astype(jnp.float32), o_ref.astype(jnp.float32), atol=1e-1, rtol=1e-1)

    print("KERNEL_OK")
</pallas_src>

<mosaic_0001>
module attributes {stable_mosaic.version = 11 : i64} {
  func.func @_mlp_kernel(%arg0: i32, %arg1: memref<256x128xbf16, #tpu.memory_space<vmem>>, %arg2: memref<128x256xbf16, #tpu.memory_space<vmem>>, %arg3: memref<1x256xf32, #tpu.memory_space<vmem>>, %arg4: memref<256x128xbf16, #tpu.memory_space<vmem>>, %arg5: memref<1x128xf32, #tpu.memory_space<vmem>>, %arg6: memref<256x128xbf16, #tpu.memory_space<vmem>>) attributes {dimension_semantics = [#tpu.dimension_semantics<parallel>], iteration_bounds = array<i64: 2>, scalar_prefetch = 0 : i64, scratch_operands = 0 : i64, tpu.core_type = #tpu.core_type<tc>, window_params = [{transform_indices = @transform_0, window_bounds = array<i64: 256, 128>}, {pipeline_mode = #tpu.pipeline_mode<synchronous>, transform_indices = @transform_1, window_bounds = array<i64: 128, 256>}, {pipeline_mode = #tpu.pipeline_mode<synchronous>, transform_indices = @transform_2, window_bounds = array<i64: 1, 256>}, {pipeline_mode = #tpu.pipeline_mode<synchronous>, transform_indices = @transform_3, window_bounds = array<i64: 256, 128>}, {pipeline_mode = #tpu.pipeline_mode<synchronous>, transform_indices = @transform_4, window_bounds = array<i64: 1, 128>}, {transform_indices = @transform_5, window_bounds = array<i64: 256, 128>}]} {
    %c0 = arith.constant 0 : index
    %c0_0 = arith.constant 0 : index
    %0 = vector.load %arg1[%c0, %c0_0] : memref<256x128xbf16, #tpu.memory_space<vmem>>, vector<256x128xbf16>
    %c0_1 = arith.constant 0 : index
    %c0_2 = arith.constant 0 : index
    %1 = vector.load %arg2[%c0_1, %c0_2] : memref<128x256xbf16, #tpu.memory_space<vmem>>, vector<128x256xbf16>
    %cst = arith.constant dense<0.000000e+00> : vector<256x256xf32>
    %2 = tpu.matmul %0, %1, %cst {dimension_numbers = #tpu.dot_dimension_numbers<[1], [0], [0], [1], [0, 0, 1, 1], [], []>} : vector<256x128xbf16>, vector<128x256xbf16>, vector<256x256xf32> -> vector<256x256xf32>
    %c0_3 = arith.constant 0 : index
    %c0_4 = arith.constant 0 : index
    %3 = vector.load %arg3[%c0_3, %c0_4] : memref<1x256xf32, #tpu.memory_space<vmem>>, vector<1x256xf32>
    %4 = vector.broadcast %3 : vector<1x256xf32> to vector<256x256xf32>
    %5 = arith.addf %2, %4 : vector<256x256xf32>
    %cst_5 = arith.constant 0.000000e+00 : f32
    %6 = vector.broadcast %cst_5 : f32 to vector<256x256xf32>
    %7 = arith.maximumf %5, %6 : vector<256x256xf32>
    %8 = arith.truncf %7 : vector<256x256xf32> to vector<256x256xbf16>
    %c0_6 = arith.constant 0 : index
    %c0_7 = arith.constant 0 : index
    %9 = vector.load %arg4[%c0_6, %c0_7] : memref<256x128xbf16, #tpu.memory_space<vmem>>, vector<256x128xbf16>
    %cst_8 = arith.constant dense<0.000000e+00> : vector<256x128xf32>
    %10 = tpu.matmul %8, %9, %cst_8 {dimension_numbers = #tpu.dot_dimension_numbers<[1], [0], [0], [1], [0, 0, 1, 1], [], []>} : vector<256x256xbf16>, vector<256x128xbf16>, vector<256x128xf32> -> vector<256x128xf32>
    %c0_9 = arith.constant 0 : index
    %c0_10 = arith.constant 0 : index
    %11 = vector.load %arg5[%c0_9, %c0_10] : memref<1x128xf32, #tpu.memory_space<vmem>>, vector<1x128xf32>
    %12 = vector.broadcast %11 : vector<1x128xf32> to vector<256x128xf32>
    %13 = arith.addf %10, %12 : vector<256x128xf32>
    %14 = arith.truncf %13 : vector<256x128xf32> to vector<256x128xbf16>
    %c0_11 = arith.constant 0 : index
    %c0_12 = arith.constant 0 : index
    %15 = vector.load %arg6[%c0_11, %c0_12] : memref<256x128xbf16, #tpu.memory_space<vmem>>, vector<256x128xbf16>
    tpu.vector_store %arg6[%c0_11, %c0_12], %14 {strides = array<i32>} : memref<256x128xbf16, #tpu.memory_space<vmem>>, vector<256x128xbf16>,
    return
  }
  func.func @transform_0(%arg0: i32) -> (i32, i32) {
    %c0_i32 = arith.constant 0 : i32
    %c0_i32_0 = arith.constant 0 : i32
    return %arg0, %c0_i32 : i32, i32
  }
  func.func @transform_1(%arg0: i32) -> (i32, i32) {
    %c0_i32 = arith.constant 0 : i32
    %c0_i32_0 = arith.constant 0 : i32
    %c0_i32_1 = arith.constant 0 : i32
    return %c0_i32, %c0_i32_0 : i32, i32
  }
  func.func @transform_2(%arg0: i32) -> (i32, i32) {
    %c0_i32 = arith.constant 0 : i32
    %c0_i32_0 = arith.constant 0 : i32
    %c0_i32_1 = arith.constant 0 : i32
    return %c0_i32, %c0_i32_0 : i32, i32
  }
  func.func @transform_3(%arg0: i32) -> (i32, i32) {
    %c0_i32 = arith.constant 0 : i32
    %c0_i32_0 = arith.constant 0 : i32
    %c0_i32_1 = arith.constant 0 : i32
    return %c0_i32, %c0_i32_0 : i32, i32
  }
  func.func @transform_4(%arg0: i32) -> (i32, i32) {
    %c0_i32 = arith.constant 0 : i32
    %c0_i32_0 = arith.constant 0 : i32
    %c0_i32_1 = arith.constant 0 : i32
    return %c0_i32, %c0_i32_0 : i32, i32
  }
  func.func @transform_5(%arg0: i32) -> (i32, i32) {
    %c0_i32 = arith.constant 0 : i32
    %c0_i32_0 = arith.constant 0 : i32
    return %arg0, %c0_i32 : i32, i32
  }
}

</mosaic_0001>

<llo_original>
// kernel: tpu_custom_call.1
$region0: #{tpu_custom_call.1}
  #allocation0 [shape = 'u32[]', space=smem, size = 0x4, offset = 0x4, fixed_abs, tag = 'smem constant byte address 0x4 - core index']
  #allocation1 [shape = 'u32[72,128]{1,0:T(1,128)}', space=vmem, size = 0x9000, scoped, tag = 'internal scratch']
  %s0 = inlined_call_operand.hbm [shape: bf16[512,128], index: 0, kind: input, shape index: {}]
  %s1 = inlined_call_operand.hbm [shape: bf16[128,256], index: 1, kind: input, shape index: {}]
  %s2 = inlined_call_operand.hbm [shape: f32[1,256], index: 2, kind: input, shape index: {}]
  %s3 = inlined_call_operand.hbm [shape: bf16[256,128], index: 3, kind: input, shape index: {}]
  %s4 = inlined_call_operand.vmem [shape: f32[1,128], index: 4, kind: input, shape index: {}]
  %s5 = inlined_call_operand.hbm [shape: bf16[512,128], index: 5, kind: output, shape index: {}]
  %s6 = sld [smem:[#allocation0]]
  $region69: #{tpu_custom_call.1} parent=0
    _
  %s8 = ssub.s32 1, %s6
  %s9 = scalar_select 0, %s8, %s6
  $region1: #{tpu_custom_call.1} parent=0
    #allocation2 [shape = 'u8[131072]{0}', space=vmem, size = 0x20000, scoped, tag = 'input window, operand 0']
    #allocation3 [shape = 's32[2]{0}', space=sflag, size = 0x8, scoped, tag = 'scoped memory for tpu_custom_call.1']
    #allocation4 [shape = 's32[2]{0}', space=sflag, size = 0x8, scoped, tag = 'scoped memory for tpu_custom_call.1']
    #allocation5 [shape = 'u8[65536]{0}', space=vmem, size = 0x10000, scoped, tag = 'input window, operand 1, single buffered']
    #allocation6 [shape = 's32[1]{0}', space=sflag, size = 0x4, scoped, tag = 'scoped memory for tpu_custom_call.1']
    #allocation7 [shape = 'u8[1024]{0}', space=vmem, size = 0x400, scoped, tag = 'input window, operand 2, single buffered']
    #allocation8 [shape = 'u8[65536]{0}', space=vmem, size = 0x10000, scoped, tag = 'input window, operand 3, single buffered']
    #allocation9 [shape = 's32[1]{0}', space=sflag, size = 0x4, scoped, tag = 'scoped memory for tpu_custom_call.1']
    #allocation10 [shape = 'u8[131072]{0}', space=vmem, size = 0x20000, scoped, tag = 'output window, operand 0']
    %10 = vsyncpa [#allocation3], 0
    %s11 = scalar_lea.sflag [#allocation3], 1
    %12 = vsyncpa %s11, 0
    %13 = vsyncpa [#allocation6], 0
    %14 = vsyncpa [#allocation9], 0
    %15 = vsyncpa [#allocation4], 0
    %s16 = scalar_lea.sflag [#allocation4], 1
    %17 = vsyncpa %s16, 0
    loop: start=0, step=1, limit=4
    $region2: #{tpu_custom_call.1} parent=1 // loop_pre_header
      _
    $region3: #{tpu_custom_call.1} parent=1 // loop_header
      %s19 = sphi 0, %s23
      %p20 = scmp.ge.s32.totalorder %s19, 4
      %s29 = sphi 0, %s31
      %s32 = sphi 0, %s29
      %s33 = sphi 0, %s32
      %s49 = sphi 0, %s33
      %s53 = sphi 0, %s53
      %s55 = sphi 0, %s53
      %s56 = sphi 0, %s55
      %s70 = sphi 0, %s56
      %s74 = sphi 0, %s74
      %s76 = sphi 0, %s74
      %s77 = sphi 0, %s76
      %s91 = sphi 0, %s77
      %s95 = sphi 0, %s95
      %s97 = sphi 0, %s95
      %s98 = sphi 0, %s97
      %s112 = sphi 0, %s98
      %s116 = sphi 0, %s116
      %s118 = sphi 0, %s116
      %s119 = sphi 0, %s118
      %s133 = sphi 0, %s119
      %s139 = sphi 0, %s141
      %s142 = sphi 0, %s139
      %s143 = sphi 0, %s142
      %s159 = sphi 0, %s143
    $region4: #{tpu_custom_call.1} parent=1 // loop_header_branch
      %22 = sbr.rel (%p20) target = $region8
    $region5: #{tpu_custom_call.1} parent=1 // loop_body
      %s24 = ssub.s32 %s19, 1
      %s25 = ssub.s32 %s19, 2
      %s26 = sadd.s32 %s19, 1
      %s27 = ssub.s32 %s19, %s26
      %p28 = scmp.eq.s32.totalorder %s27, 0
      %s30 = sadd.s32 %s29, 1
      %s31 = scalar_select %p28, %s29, %s30
      %p34 = pneg %p28
      %p35 = scmp.eq.s32.totalorder %s19, 1
      %p36 = por %p34, %p35
      %p37 = scmp.ne.s32.totalorder %s29, %s32
      %p38 = scmp.eq.s32.totalorder %s19, 0
      %p39 = por %p37, %p38
      %p40 = scmp.ne.s32.totalorder %s29, %s32
      %p41 = scmp.eq.s32.totalorder %s24, 1
      %p42 = por %p40, %p41
      %p43 = scmp.ne.s32.totalorder %s32, %s33
      %p44 = scmp.eq.s32.totalorder %s24, 0
      %p45 = por %p43, %p44
      %p46 = scmp.ne.s32.totalorder %s32, %s33
      %p47 = scmp.eq.s32.totalorder %s25, 1
      %p48 = por %p46, %p47
      %p50 = scmp.ne.s32.totalorder %s33, %s49
      %p51 = scmp.eq.s32.totalorder %s25, 0
      %p52 = por %p50, %p51
      %s54 = sadd.s32 %s53, 1
      %p57 = scmp.eq.s32.totalorder %s19, 1
      %p58 = scmp.ne.s32.totalorder %s53, %s55
      %p59 = scmp.eq.s32.totalorder %s19, 0
      %p60 = por %p58, %p59
      %p61 = scmp.ne.s32.totalorder %s53, %s55
      %p62 = scmp.eq.s32.totalorder %s24, 1
      %p63 = por %p61, %p62
      %p64 = scmp.ne.s32.totalorder %s55, %s56
      %p65 = scmp.eq.s32.totalorder %s24, 0
      %p66 = por %p64, %p65
      %p67 = scmp.ne.s32.totalorder %s55, %s56
      %p68 = scmp.eq.s32.totalorder %s25, 1
      %p69 = por %p67, %p68
      %p71 = scmp.ne.s32.totalorder %s56, %s70
      %p72 = scmp.eq.s32.totalorder %s25, 0
      %p73 = por %p71, %p72
      %s75 = sadd.s32 %s74, 1
      %p78 = scmp.eq.s32.totalorder %s19, 1
      %p79 = scmp.ne.s32.totalorder %s74, %s76
      %p80 = scmp.eq.s32.totalorder %s19, 0
      %p81 = por %p79, %p80
      %p82 = scmp.ne.s32.totalorder %s74, %s76
      %p83 = scmp.eq.s32.totalorder %s24, 1
      %p84 = por %p82, %p83
      %p85 = scmp.ne.s32.totalorder %s76, %s77
      %p86 = scmp.eq.s32.totalorder %s24, 0
      %p87 = por %p85, %p86
      %p88 = scmp.ne.s32.totalorder %s76, %s77
      %p89 = scmp.eq.s32.totalorder %s25, 1
      %p90 = por %p88, %p89
      %p92 = scmp.ne.s32.totalorder %s77, %s91
      %p93 = scmp.eq.s32.totalorder %s25, 0
      %p94 = por %p92, %p93
      %s96 = sadd.s32 %s95, 1
      %p99 = scmp.eq.s32.totalorder %s19, 1
      %p100 = scmp.ne.s32.totalorder %s95, %s97
      %p101 = scmp.eq.s32.totalorder %s19, 0
      %p102 = por %p100, %p101
      %p103 = scmp.ne.s32.totalorder %s95, %s97
      %p104 = scmp.eq.s32.totalorder %s24, 1
      %p105 = por %p103, %p104
      %p106 = scmp.ne.s32.totalorder %s97, %s98
      %p107 = scmp.eq.s32.totalorder %s24, 0
      %p108 = por %p106, %p107
      %p109 = scmp.ne.s32.totalorder %s97, %s98
      %p110 = scmp.eq.s32.totalorder %s25, 1
      %p111 = por %p109, %p110
      %p113 = scmp.ne.s32.totalorder %s98, %s112
      %p114 = scmp.eq.s32.totalorder %s25, 0
      %p115 = por %p113, %p114
      %s117 = sadd.s32 %s116, 1
      %p120 = scmp.eq.s32.totalorder %s19, 1
      %p121 = scmp.ne.s32.totalorder %s116, %s118
      %p122 = scmp.eq.s32.totalorder %s19, 0
      %p123 = por %p121, %p122
      %p124 = scmp.ne.s32.totalorder %s116, %s118
      %p125 = scmp.eq.s32.totalorder %s24, 1
      %p126 = por %p124, %p125
      %p127 = scmp.ne.s32.totalorder %s118, %s119
      %p128 = scmp.eq.s32.totalorder %s24, 0
      %p129 = por %p127, %p128
      %p130 = scmp.ne.s32.totalorder %s118, %s119
      %p131 = scmp.eq.s32.totalorder %s25, 1
      %p132 = por %p130, %p131
      %p134 = scmp.ne.s32.totalorder %s119, %s133
      %p135 = scmp.eq.s32.totalorder %s25, 0
      %p136 = por %p134, %p135
      %s137 = ssub.s32 %s19, %s26
      %p138 = scmp.eq.s32.totalorder %s137, 0
      %s140 = sadd.s32 %s139, 1
      %s141 = scalar_select %p138, %s139, %s140
      %p144 = pneg %p138
      %p145 = scmp.eq.s32.totalorder %s19, 1
      %p146 = por %p144, %p145
      %p147 = scmp.ne.s32.totalorder %s139, %s142
      %p148 = scmp.eq.s32.totalorder %s19, 0
      %p149 = por %p147, %p148
      %p150 = scmp.ne.s32.totalorder %s139, %s142
      %p151 = scmp.eq.s32.totalorder %s24, 1
      %p152 = por %p150, %p151
      %p153 = scmp.ne.s32.totalorder %s142, %s143
      %p154 = scmp.eq.s32.totalorder %s24, 0
      %p155 = por %p153, %p154
      %p156 = scmp.ne.s32.totalorder %s142, %s143
      %p157 = scmp.eq.s32.totalorder %s25, 1
      %p158 = por %p156, %p157
      %p160 = scmp.ne.s32.totalorder %s143, %s159
      %p161 = scmp.eq.s32.totalorder %s25, 0
      %p162 = por %p160, %p161
      %p163 = scmp.le.s32.totalorder 1, %s19
      %p164 = scmp.lt.s32.totalorder %s19, 3
      %p165 = pnand %p163, %p164
      %p166 = pneg %p165
      // Predicated region
      $region9: #{tpu_custom_call.1} parent=5 // pred_check
        _
      $region10: #{tpu_custom_call.1} parent=5 // pred_check_branch
        %168 = sbr.rel (%p165) target = $region12
      $region11: #{tpu_custom_call.1} parent=5 // pred_region
        %s169 = ssub.s32 %s19, 1
        // Predicated region
        $region13: #{tpu_custom_call.1} parent=11 // pred_check
          %p170 = pneg %p66
        $region14: #{tpu_custom_call.1} parent=11 // pred_check_branch
          %172 = sbr.rel (%p170) target = $region16
        $region15: #{tpu_custom_call.1} parent=11 // pred_region
          %174 = vsyncadd [#allocation6], 0
          %s175 = sshll.u32 %s1, 4
          %s176 = int_to_ptr.hbm [resolvable:$true] %s175
          %s177 = sshll.u32 [#allocation5], 4
          %s178 = int_to_ptr.vmem [resolvable:$true] %s177
          %183 = dma.hbm_to_vmem [thread:$0]  %s176, 2048, %s178, [#allocation6], 128, 128, 8
        $region16: #{tpu_custom_call.1} parent=11 // pred_fallthru
          _
        // Predicated region
        $region17: #{tpu_custom_call.1} parent=11 // pred_check
          %p184 = pneg %p87
        $region18: #{tpu_custom_call.1} parent=11 // pred_check_branch
          %186 = sbr.rel (%p184) target = $region20
        $region19: #{tpu_custom_call.1} parent=11 // pred_region
          %188 = vsyncadd [#allocation6], 0
          %s190 = sshll.u32 %s2, 4
          %s191 = int_to_ptr.hbm [resolvable:$true] %s190
          %s192 = sshll.u32 [#allocation7], 4
          %s193 = int_to_ptr.vmem [resolvable:$true] %s192
          %195 = dma.hbm_to_vmem [thread:$0]  %s191, 32, %s193, [#allocation6]
        $region20: #{tpu_custom_call.1} parent=11 // pred_fallthru
          _
        // Predicated region
        $region21: #{tpu_custom_call.1} parent=11 // pred_check
          %p196 = pneg %p108
        $region22: #{tpu_custom_call.1} parent=11 // pred_check_branch
          %198 = sbr.rel (%p196) target = $region24
        $region23: #{tpu_custom_call.1} parent=11 // pred_region
          %200 = vsyncadd [#allocation9], 0
          %s201 = sshll.u32 %s3, 4
          %s202 = int_to_ptr.hbm [resolvable:$true] %s201
          %s203 = sshll.u32 [#allocation8], 4
          %s204 = int_to_ptr.vmem [resolvable:$true] %s203
          %209 = dma.hbm_to_vmem [thread:$0]  %s202, 2048, %s204, [#allocation9], 64, 64, 4
        $region24: #{tpu_custom_call.1} parent=11 // pred_fallthru
          _
        // Predicated region
        $region25: #{tpu_custom_call.1} parent=11 // pred_check
          %p210 = pneg %p129
        $region26: #{tpu_custom_call.1} parent=11 // pred_check_branch
          %212 = sbr.rel (%p210) target = $region28
        $region27: #{tpu_custom_call.1} parent=11 // pred_region
          _
        $region28: #{tpu_custom_call.1} parent=11 // pred_fallthru
          _
      $region12: #{tpu_custom_call.1} parent=5 // pred_fallthru
        _
      %p213 = scmp.lt.s32.totalorder %s19, 2
      // Predicated region
      $region29: #{tpu_custom_call.1} parent=5 // pred_check
        %p214 = pneg %p213
      $region30: #{tpu_custom_call.1} parent=5 // pred_check_branch
        %216 = sbr.rel (%p214) target = $region32
      $region31: #{tpu_custom_call.1} parent=5 // pred_region
        // Predicated region
        $region33: #{tpu_custom_call.1} parent=31 // pred_check
          %p217 = pneg %p39
        $region34: #{tpu_custom_call.1} parent=31 // pred_check_branch
          %219 = sbr.rel (%p217) target = $region36
        $region35: #{tpu_custom_call.1} parent=31 // pred_region
          %s220 = sand.u32 %s29, 1
          %s221 = scalar_lea.sflag [#allocation3], %s220
          %s222 = sand.u32 %s29, 1
          %s223 = smul.addr %s222, 128
          %s224 = scalar_lea.vmem [#allocation2], %s223
          %s225 = smul.u32 32, %s19
          %227 = vsyncadd %s221, 0
          %s228 = smul.addr %s225, 4
          %s229 = scalar_lea.hbm %s0, %s228
          %s230 = sshll.u32 %s229, 4
          %s231 = int_to_ptr.hbm [resolvable:$true] %s230
          %s232 = sshll.u32 %s224, 4
          %s233 = int_to_ptr.vmem [resolvable:$true] %s232
          %238 = dma.hbm_to_vmem [thread:$0]  %s231, 2048, %s233, %s221, 64, 64, 4
        $region36: #{tpu_custom_call.1} parent=31 // pred_fallthru
          _
      $region32: #{tpu_custom_call.1} parent=5 // pred_fallthru
        _
      %p239 = scmp.le.s32.totalorder 1, %s19
      %p240 = scmp.lt.s32.totalorder %s19, 3
      %p241 = pnand %p239, %p240
      %p242 = pneg %p241
      // Predicated region
      $region37: #{tpu_custom_call.1} parent=5 // pred_check
        _
      $region38: #{tpu_custom_call.1} parent=5 // pred_check_branch
        %244 = sbr.rel (%p241) target = $region40
      $region39: #{tpu_custom_call.1} parent=5 // pred_region
        %s245 = ssub.s32 %s19, 1
        %s246 = sand.u32 %s32, 1
        %s247 = scalar_lea.sflag [#allocation3], %s246
        %s248 = sand.u32 %s32, 1
        %s249 = smul.addr %s248, 128
        %s250 = scalar_lea.vmem [#allocation2], %s249
        // Predicated region
        $region41: #{tpu_custom_call.1} parent=39 // pred_check
          %p251 = pneg %p45
        $region42: #{tpu_custom_call.1} parent=39 // pred_check_branch
          %253 = sbr.rel (%p251) target = $region44
        $region43: #{tpu_custom_call.1} parent=39 // pred_region
          %255 = dma.done %s247, 2048
        $region44: #{tpu_custom_call.1} parent=39 // pred_fallthru
          _
        // Predicated region
        $region45: #{tpu_custom_call.1} parent=39 // pred_check
          %p256 = pneg %p66
        $region46: #{tpu_custom_call.1} parent=39 // pred_check_branch
          %258 = sbr.rel (%p256) target = $region48
        $region47: #{tpu_custom_call.1} parent=39 // pred_region
          %260 = dma.done [#allocation6], 2048
        $region48: #{tpu_custom_call.1} parent=39 // pred_fallthru
          _
        // Predicated region
        $region49: #{tpu_custom_call.1} parent=39 // pred_check
          %p261 = pneg %p87
        $region50: #{tpu_custom_call.1} parent=39 // pred_check_branch
          %263 = sbr.rel (%p261) target = $region52
        $region51: #{tpu_custom_call.1} parent=39 // pred_region
          %265 = dma.done [#allocation6], 32
        $region52: #{tpu_custom_call.1} parent=39 // pred_fallthru
          _
        // Predicated region
        $region53: #{tpu_custom_call.1} parent=39 // pred_check
          %p266 = pneg %p108
        $region54: #{tpu_custom_call.1} parent=39 // pred_check_branch
          %268 = sbr.rel (%p266) target = $region56
        $region55: #{tpu_custom_call.1} parent=39 // pred_region
          %270 = dma.done [#allocation9], 2048
        $region56: #{tpu_custom_call.1} parent=39 // pred_fallthru
          _
        %s271 = sand.u32 %s32, 1
        %s272 = scalar_lea.sflag [#allocation3], %s271
        %s273 = sand.u32 %s32, 1
        %s274 = smul.addr %s273, 128
        %s275 = scalar_lea.vmem [#allocation2], %s274
        %p276 = pneg %p45
        %p277 = pneg %p42
        %p278 = pneg %p66
        %p279 = pneg %p63
        %p280 = pneg %p87
        %p281 = pneg %p84
        %p282 = pneg %p108
        %p283 = pneg %p105
        %p284 = pneg %p129
        %p285 = pneg %p126
        %p286 = pneg %p155
        %p287 = pneg %p152
        %s288 = sand.u32 %s142, 1
        %s289 = scalar_lea.sflag [#allocation4], %s288
        %s290 = sand.u32 %s142, 1
        %s291 = smul.addr %s290, 128
        %s292 = scalar_lea.vmem [#allocation10], %s291
        %s293 = smul.u32 32, %s24
        %s294 = smul.u32 32, %s24
        %v295 = vld [vmem:[%s250] sm:$0xf]
        %v296 = vld [vmem:[%s250 + $0x4] sm:$0xf]
        %v297 = vld [vmem:[%s250 + $0x8] sm:$0xf]
        %v298 = vld [vmem:[%s250 + $0xc] sm:$0xf]
        %v299 = vld [vmem:[%s250 + $0x10] sm:$0xf]
        %v300 = vld [vmem:[%s250 + $0x14] sm:$0xf]
        %v301 = vld [vmem:[%s250 + $0x18] sm:$0xf]
        %v302 = vld [vmem:[%s250 + $0x1c] sm:$0xf]
        %v303 = vld [vmem:[%s250 + $0x20] sm:$0xf]
        %v304 = vld [vmem:[%s250 + $0x24] sm:$0xf]
        %v305 = vld [vmem:[%s250 + $0x28] sm:$0xf]
        %v306 = vld [vmem:[%s250 + $0x2c] sm:$0xf]
        %v307 = vld [vmem:[%s250 + $0x30] sm:$0xf]
        %v308 = vld [vmem:[%s250 + $0x34] sm:$0xf]
        %v309 = vld [vmem:[%s250 + $0x38] sm:$0xf]
        %v310 = vld [vmem:[%s250 + $0x3c] sm:$0xf]
        %v311 = vld [vmem:[%s250 + $0x40] sm:$0xf]
        %v312 = vld [vmem:[%s250 + $0x44] sm:$0xf]
        %v313 = vld [vmem:[%s250 + $0x48] sm:$0xf]
        %v314 = vld [vmem:[%s250 + $0x4c] sm:$0xf]
        %v315 = vld [vmem:[%s250 + $0x50] sm:$0xf]
        %v316 = vld [vmem:[%s250 + $0x54] sm:$0xf]
        %v317 = vld [vmem:[%s250 + $0x58] sm:$0xf]
        %v318 = vld [vmem:[%s250 + $0x5c] sm:$0xf]
        %v319 = vld [vmem:[%s250 + $0x60] sm:$0xf]
        %v320 = vld [vmem:[%s250 + $0x64] sm:$0xf]
        %v321 = vld [vmem:[%s250 + $0x68] sm:$0xf]
        %v322 = vld [vmem:[%s250 + $0x6c] sm:$0xf]
        %v323 = vld [vmem:[%s250 + $0x70] sm:$0xf]
        %v324 = vld [vmem:[%s250 + $0x74] sm:$0xf]
        %v325 = vld [vmem:[%s250 + $0x78] sm:$0xf]
        %v326 = vld [vmem:[%s250 + $0x7c] sm:$0xf]
        %v327 = vld [vmem:[#allocation5] sm:$0xff]
        %v328 = vld [vmem:[#allocation5 + $0x8] sm:$0xff]
        %v329 = vld [vmem:[#allocation5 + $0x10] sm:$0xff]
        %v330 = vld [vmem:[#allocation5 + $0x18] sm:$0xff]
        %v331 = vld [vmem:[#allocation5 + $0x20] sm:$0xff]
        %v332 = vld [vmem:[#allocation5 + $0x28] sm:$0xff]
        %v333 = vld [vmem:[#allocation5 + $0x30] sm:$0xff]
        %v334 = vld [vmem:[#allocation5 + $0x38] sm:$0xff]
        %v335 = vld [vmem:[#allocation5 + $0x40] sm:$0xff]
        %v336 = vld [vmem:[#allocation5 + $0x48] sm:$0xff]
        %v337 = vld [vmem:[#allocation5 + $0x50] sm:$0xff]
        %v338 = vld [vmem:[#allocation5 + $0x58] sm:$0xff]
        %v339 = vld [vmem:[#allocation5 + $0x60] sm:$0xff]
        %v340 = vld [vmem:[#allocation5 + $0x68] sm:$0xff]
        %v341 = vld [vmem:[#allocation5 + $0x70] sm:$0xff]
        %v342 = vld [vmem:[#allocation5 + $0x78] sm:$0xff]
        %v343 = vld [vmem:[#allocation7] sm:$0x3]
        %v345 = vperm.slane %v343, 0
        %v346 = vperm.slane %v343, 1
        %v381 = vunpack.c.l.b16 %v295
        %v382 = vunpack.c.l.b16 %v296
        %v383 = vunpack.c.l.b16 %v297
        %v384 = vunpack.c.l.b16 %v298
        %v385 = vunpack.c.l.b16 %v299
        %v386 = vunpack.c.l.b16 %v300
        %v387 = vunpack.c.l.b16 %v301
        %v388 = vunpack.c.l.b16 %v302
        %v389 = vunpack.c.l.b16 %v303
        %v390 = vunpack.c.l.b16 %v304
        %v391 = vunpack.c.l.b16 %v305
        %v392 = vunpack.c.l.b16 %v306
        %v393 = vunpack.c.l.b16 %v307
        %v394 = vunpack.c.l.b16 %v308
        %v395 = vunpack.c.l.b16 %v309
        %v396 = vunpack.c.l.b16 %v310
        %v397 = vunpack.c.l.b16 %v311
        %v398 = vunpack.c.l.b16 %v312
        %v399 = vunpack.c.l.b16 %v313
        %v400 = vunpack.c.l.b16 %v314
        %v401 = vunpack.c.l.b16 %v315
        %v402 = vunpack.c.l.b16 %v316
        %v403 = vunpack.c.l.b16 %v317
        %v404 = vunpack.c.l.b16 %v318
        %v405 = vunpack.c.l.b16 %v319
        %v406 = vunpack.c.l.b16 %v320
        %v407 = vunpack.c.l.b16 %v321
        %v408 = vunpack.c.l.b16 %v322
        %v409 = vunpack.c.l.b16 %v323
        %v410 = vunpack.c.l.b16 %v324
        %v411 = vunpack.c.l.b16 %v325
        %v412 = vunpack.c.l.b16 %v326
        %v413 = vpack.c.b16 %v382, %v381
        %v414 = vpack.c.b16 %v384, %v383
        %v415 = vpack.c.b16 %v386, %v385
        %v416 = vpack.c.b16 %v388, %v387
        %v417 = vpack.c.b16 %v390, %v389
        %v418 = vpack.c.b16 %v392, %v391
        %v419 = vpack.c.b16 %v394, %v393
        %v420 = vpack.c.b16 %v396, %v395
        %v421 = vpack.c.b16 %v398, %v397
        %v422 = vpack.c.b16 %v400, %v399
        %v423 = vpack.c.b16 %v402, %v401
        %v424 = vpack.c.b16 %v404, %v403
        %v425 = vpack.c.b16 %v406, %v405
        %v426 = vpack.c.b16 %v408, %v407
        %v427 = vpack.c.b16 %v410, %v409
        %v428 = vpack.c.b16 %v412, %v411
        %v461 = vunpack.c.l.b16 %v327
        %v462 = vunpack.c.h.b16 %v327
        %v463 = vunpack.c.l.b16 %v328
        %v464 = vunpack.c.h.b16 %v328
        %v465 = vunpack.c.l.b16 %v329
        %v466 = vunpack.c.h.b16 %v329
        %v467 = vunpack.c.l.b16 %v330
        %v468 = vunpack.c.h.b16 %v330
        %v469 = vunpack.c.l.b16 %v331
        %v470 = vunpack.c.h.b16 %v331
        %v471 = vunpack.c.l.b16 %v332
        %v472 = vunpack.c.h.b16 %v332
        %v473 = vunpack.c.l.b16 %v333
        %v474 = vunpack.c.h.b16 %v333
        %v475 = vunpack.c.l.b16 %v334
        %v476 = vunpack.c.h.b16 %v334
        %v477 = vunpack.c.l.b16 %v335
        %v478 = vunpack.c.h.b16 %v335
        %v479 = vunpack.c.l.b16 %v336
        %v480 = vunpack.c.h.b16 %v336
        %v481 = vunpack.c.l.b16 %v337
        %v482 = vunpack.c.h.b16 %v337
        %v483 = vunpack.c.l.b16 %v338
        %v484 = vunpack.c.h.b16 %v338
        %v485 = vunpack.c.l.b16 %v339
        %v486 = vunpack.c.h.b16 %v339
        %v487 = vunpack.c.l.b16 %v340
        %v488 = vunpack.c.h.b16 %v340
        %v489 = vunpack.c.l.b16 %v341
        %v490 = vunpack.c.h.b16 %v341
        %v491 = vunpack.c.l.b16 %v342
        %v492 = vunpack.c.h.b16 %v342
        %v493 = vpack.c.b16 %v463, %v461
        %v494 = vpack.c.b16 %v464, %v462
        %v495 = vpack.c.b16 %v467, %v465
        %v496 = vpack.c.b16 %v468, %v466
        %v497 = vpack.c.b16 %v471, %v469
        %v498 = vpack.c.b16 %v472, %v470
        %v499 = vpack.c.b16 %v475, %v473
        %v500 = vpack.c.b16 %v476, %v474
        %v501 = vpack.c.b16 %v479, %v477
        %v502 = vpack.c.b16 %v480, %v478
        %v503 = vpack.c.b16 %v483, %v481
        %v504 = vpack.c.b16 %v484, %v482
        %v505 = vpack.c.b16 %v487, %v485
        %v506 = vpack.c.b16 %v488, %v486
        %v507 = vpack.c.b16 %v491, %v489
        %v508 = vpack.c.b16 %v492, %v490
        %525 = vmatpush.bf16.msra.mxu0 %v507
        %526 = vmatpush.bf16.msra.mxu0 %v505
        %527 = vmatpush.bf16.msra.mxu0 %v503
        %528 = vmatpush.bf16.msra.mxu0 %v501
        %529 = vmatpush.bf16.msra.mxu0 %v499
        %530 = vmatpush.bf16.msra.mxu0 %v497
        %531 = vmatpush.bf16.msra.mxu0 %v495
        %532 = vmatpush.bf16.msra.mxu0 %v493
        %533 = vmatmul.bf16.gmra.mxu0 %v413
        %v534 = vpop.f32.mrf.mxu0
        %v535 = vadd.f32 %v345, %v534
        %v536 = vpop.f32.mrf.mxu0
        %v537 = vadd.f32 %v345, %v536
        %538 = vmatmul.bf16.gmra.mxu0 %v414
        %v539 = vpop.f32.mrf.mxu0
        %v540 = vadd.f32 %v345, %v539
        %v541 = vpop.f32.mrf.mxu0
        %v542 = vadd.f32 %v345, %v541
        %543 = vmatmul.bf16.gmra.mxu0 %v415
        %v544 = vpop.f32.mrf.mxu0
        %v545 = vadd.f32 %v345, %v544
        %v546 = vpop.f32.mrf.mxu0
        %v547 = vadd.f32 %v345, %v546
        %548 = vmatmul.bf16.gmra.mxu0 %v416
        %v549 = vpop.f32.mrf.mxu0
        %v550 = vadd.f32 %v345, %v549
        %v551 = vpop.f32.mrf.mxu0
        %v552 = vadd.f32 %v345, %v551
        %553 = vmatmul.bf16.gmra.mxu0 %v417
        %v554 = vpop.f32.mrf.mxu0
        %v555 = vadd.f32 %v345, %v554
        %v556 = vpop.f32.mrf.mxu0
        %v557 = vadd.f32 %v345, %v556
        %558 = vmatmul.bf16.gmra.mxu0 %v418
        %v559 = vpop.f32.mrf.mxu0
        %v560 = vadd.f32 %v345, %v559
        %v561 = vpop.f32.mrf.mxu0
        %v562 = vadd.f32 %v345, %v561
        %563 = vmatmul.bf16.gmra.mxu0 %v419
        %v564 = vpop.f32.mrf.mxu0
        %v565 = vadd.f32 %v345, %v564
        %v566 = vpop.f32.mrf.mxu0
        %v567 = vadd.f32 %v345, %v566
        %568 = vmatmul.bf16.gmra.mxu0 %v420
        %v569 = vpop.f32.mrf.mxu0
        %v570 = vadd.f32 %v345, %v569
        %v571 = vpop.f32.mrf.mxu0
        %v572 = vadd.f32 %v345, %v571
        %573 = vmatmul.bf16.gmra.mxu0 %v421
        %v574 = vpop.f32.mrf.mxu0
        %v575 = vadd.f32 %v345, %v574
        %v576 = vpop.f32.mrf.mxu0
        %v577 = vadd.f32 %v345, %v576
        %578 = vmatmul.bf16.gmra.mxu0 %v422
        %v579 = vpop.f32.mrf.mxu0
        %v580 = vadd.f32 %v345, %v579
        %v581 = vpop.f32.mrf.mxu0
        %v582 = vadd.f32 %v345, %v581
        %583 = vmatmul.bf16.gmra.mxu0 %v423
        %v584 = vpop.f32.mrf.mxu0
        %v585 = vadd.f32 %v345, %v584
        %v586 = vpop.f32.mrf.mxu0
        %v587 = vadd.f32 %v345, %v586
        %588 = vmatmul.bf16.gmra.mxu0 %v424
        %v589 = vpop.f32.mrf.mxu0
        %v590 = vadd.f32 %v345, %v589
        %v591 = vpop.f32.mrf.mxu0
        %v592 = vadd.f32 %v345, %v591
        %593 = vmatmul.bf16.gmra.mxu0 %v425
        %v594 = vpop.f32.mrf.mxu0
        %v595 = vadd.f32 %v345, %v594
        %v596 = vpop.f32.mrf.mxu0
        %v597 = vadd.f32 %v345, %v596
        %598 = vmatmul.bf16.gmra.mxu0 %v426
        %v599 = vpop.f32.mrf.mxu0
        %v600 = vadd.f32 %v345, %v599
        %v601 = vpop.f32.mrf.mxu0
        %v602 = vadd.f32 %v345, %v601
        %603 = vmatmul.bf16.gmra.mxu0 %v427
        %v604 = vpop.f32.mrf.mxu0
        %v605 = vadd.f32 %v345, %v604
        %v606 = vpop.f32.mrf.mxu0
        %v607 = vadd.f32 %v345, %v606
        %608 = vmatmul.bf16.gmra.mxu0 %v428
        %v609 = vpop.f32.mrf.mxu0
        %v610 = vadd.f32 %v345, %v609
        %v611 = vpop.f32.mrf.mxu0
        %v612 = vadd.f32 %v345, %v611
        %613 = vdwg.mxu0
        %614 = vmatpush.bf16.msra.mxu0 %v508
        %615 = vmatpush.bf16.msra.mxu0 %v506
        %616 = vmatpush.bf16.msra.mxu0 %v504
        %617 = vmatpush.bf16.msra.mxu0 %v502
        %618 = vmatpush.bf16.msra.mxu0 %v500
        %619 = vmatpush.bf16.msra.mxu0 %v498
        %620 = vmatpush.bf16.msra.mxu0 %v496
        %621 = vmatpush.bf16.msra.mxu0 %v494
        %622 = vmatmul.bf16.gmra.mxu0 %v413
        %v623 = vpop.f32.mrf.mxu0
        %v624 = vadd.f32 %v346, %v623
        %v625 = vpop.f32.mrf.mxu0
        %v626 = vadd.f32 %v346, %v625
        %627 = vmatmul.bf16.gmra.mxu0 %v414
        %v628 = vpop.f32.mrf.mxu0
        %v629 = vadd.f32 %v346, %v628
        %v630 = vpop.f32.mrf.mxu0
        %v631 = vadd.f32 %v346, %v630
        %632 = vmatmul.bf16.gmra.mxu0 %v415
        %v633 = vpop.f32.mrf.mxu0
        %v634 = vadd.f32 %v346, %v633
        %v635 = vpop.f32.mrf.mxu0
        %v636 = vadd.f32 %v346, %v635
        %637 = vmatmul.bf16.gmra.mxu0 %v416
        %v638 = vpop.f32.mrf.mxu0
        %v639 = vadd.f32 %v346, %v638
        %v640 = vpop.f32.mrf.mxu0
        %v641 = vadd.f32 %v346, %v640
        %642 = vmatmul.bf16.gmra.mxu0 %v417
        %v643 = vpop.f32.mrf.mxu0
        %v644 = vadd.f32 %v346, %v643
        %v645 = vpop.f32.mrf.mxu0
        %v646 = vadd.f32 %v346, %v645
        %647 = vmatmul.bf16.gmra.mxu0 %v418
        %v648 = vpop.f32.mrf.mxu0
        %v649 = vadd.f32 %v346, %v648
        %v650 = vpop.f32.mrf.mxu0
        %v651 = vadd.f32 %v346, %v650
        %652 = vmatmul.bf16.gmra.mxu0 %v419
        %v653 = vpop.f32.mrf.mxu0
        %v654 = vadd.f32 %v346, %v653
        %v655 = vpop.f32.mrf.mxu0
        %v656 = vadd.f32 %v346, %v655
        %657 = vmatmul.bf16.gmra.mxu0 %v420
        %v658 = vpop.f32.mrf.mxu0
        %v659 = vadd.f32 %v346, %v658
        %v660 = vpop.f32.mrf.mxu0
        %v661 = vadd.f32 %v346, %v660
        %662 = vmatmul.bf16.gmra.mxu0 %v421
        %v663 = vpop.f32.mrf.mxu0
        %v664 = vadd.f32 %v346, %v663
        %v665 = vpop.f32.mrf.mxu0
        %v666 = vadd.f32 %v346, %v665
        %667 = vmatmul.bf16.gmra.mxu0 %v422
        %v668 = vpop.f32.mrf.mxu0
        %v669 = vadd.f32 %v346, %v668
        %v670 = vpop.f32.mrf.mxu0
        %v671 = vadd.f32 %v346, %v670
        %672 = vmatmul.bf16.gmra.mxu0 %v423
        %v673 = vpop.f32.mrf.mxu0
        %v674 = vadd.f32 %v346, %v673
        %v675 = vpop.f32.mrf.mxu0
        %v676 = vadd.f32 %v346, %v675
        %677 = vmatmul.bf16.gmra.mxu0 %v424
        %v678 = vpop.f32.mrf.mxu0
        %v679 = vadd.f32 %v346, %v678
        %v680 = vpop.f32.mrf.mxu0
        %v681 = vadd.f32 %v346, %v680
        %682 = vmatmul.bf16.gmra.mxu0 %v425
        %v683 = vpop.f32.mrf.mxu0
        %v684 = vadd.f32 %v346, %v683
        %v685 = vpop.f32.mrf.mxu0
        %v686 = vadd.f32 %v346, %v685
        %687 = vmatmul.bf16.gmra.mxu0 %v426
        %v688 = vpop.f32.mrf.mxu0
        %v689 = vadd.f32 %v346, %v688
        %v690 = vpop.f32.mrf.mxu0
        %v691 = vadd.f32 %v346, %v690
        %692 = vmatmul.bf16.gmra.mxu0 %v427
        %v693 = vpop.f32.mrf.mxu0
        %v694 = vadd.f32 %v346, %v693
        %v695 = vpop.f32.mrf.mxu0
        %v696 = vadd.f32 %v346, %v695
        %697 = vmatmul.bf16.gmra.mxu0 %v428
        %v698 = vpop.f32.mrf.mxu0
        %v699 = vadd.f32 %v346, %v698
        %v700 = vpop.f32.mrf.mxu0
        %v701 = vadd.f32 %v346, %v700
        %702 = vdwg.mxu0
        %v703 = vmax.f32 %v535, 0.0
        %v704 = vmax.f32 %v624, 0.0
        %v705 = vmax.f32 %v537, 0.0
        %v706 = vmax.f32 %v626, 0.0
        %v707 = vmax.f32 %v540, 0.0
        %v708 = vmax.f32 %v629, 0.0
        %v709 = vmax.f32 %v542, 0.0
        %v710 = vmax.f32 %v631, 0.0
        %v711 = vmax.f32 %v545, 0.0
        %v712 = vmax.f32 %v634, 0.0
        %v713 = vmax.f32 %v547, 0.0
        %v714 = vmax.f32 %v636, 0.0
        %v715 = vmax.f32 %v550, 0.0
        %v716 = vmax.f32 %v639, 0.0
        %v717 = vmax.f32 %v552, 0.0
        %v718 = vmax.f32 %v641, 0.0
        %v719 = vmax.f32 %v555, 0.0
        %v720 = vmax.f32 %v644, 0.0
        %v721 = vmax.f32 %v557, 0.0
        %v722 = vmax.f32 %v646, 0.0
        %v723 = vmax.f32 %v560, 0.0
        %v724 = vmax.f32 %v649, 0.0
        %v725 = vmax.f32 %v562, 0.0
        %v726 = vmax.f32 %v651, 0.0
        %v727 = vmax.f32 %v565, 0.0
        %v728 = vmax.f32 %v654, 0.0
        %v729 = vmax.f32 %v567, 0.0
        %v730 = vmax.f32 %v656, 0.0
        %v731 = vmax.f32 %v570, 0.0
        %v732 = vmax.f32 %v659, 0.0
        %v733 = vmax.f32 %v572, 0.0
        %v734 = vmax.f32 %v661, 0.0
        %v735 = vmax.f32 %v575, 0.0
        %v736 = vmax.f32 %v664, 0.0
        %v737 = vmax.f32 %v577, 0.0
        %v738 = vmax.f32 %v666, 0.0
        %v739 = vmax.f32 %v580, 0.0
        %v740 = vmax.f32 %v669, 0.0
        %v741 = vmax.f32 %v582, 0.0
        %v742 = vmax.f32 %v671, 0.0
        %v743 = vmax.f32 %v585, 0.0
        %v744 = vmax.f32 %v674, 0.0
        %v745 = vmax.f32 %v587, 0.0
        %v746 = vmax.f32 %v676, 0.0
        %v747 = vmax.f32 %v590, 0.0
        %v748 = vmax.f32 %v679, 0.0
        %v749 = vmax.f32 %v592, 0.0
        %v750 = vmax.f32 %v681, 0.0
        %v751 = vmax.f32 %v595, 0.0
        %v752 = vmax.f32 %v684, 0.0
        %v753 = vmax.f32 %v597, 0.0
        %v754 = vmax.f32 %v686, 0.0
        %v755 = vmax.f32 %v600, 0.0
        %v756 = vmax.f32 %v689, 0.0
        %v757 = vmax.f32 %v602, 0.0
        %v758 = vmax.f32 %v691, 0.0
        %v759 = vmax.f32 %v605, 0.0
        %v760 = vmax.f32 %v694, 0.0
        %v761 = vmax.f32 %v607, 0.0
        %v762 = vmax.f32 %v696, 0.0
        %v763 = vmax.f32 %v610, 0.0
        %v764 = vmax.f32 %v699, 0.0
        %v765 = vmax.f32 %v612, 0.0
        %v766 = vmax.f32 %v701, 0.0
        %v767 = vpack.c.bf16 %v705, %v703
        %v768 = vpack.c.bf16 %v706, %v704
        %v769 = vpack.c.bf16 %v709, %v707
        %v770 = vpack.c.bf16 %v710, %v708
        %v771 = vpack.c.bf16 %v713, %v711
        %v772 = vpack.c.bf16 %v714, %v712
        %v773 = vpack.c.bf16 %v717, %v715
        %v774 = vpack.c.bf16 %v718, %v716
        %v775 = vpack.c.bf16 %v721, %v719
        %v776 = vpack.c.bf16 %v722, %v720
        %v777 = vpack.c.bf16 %v725, %v723
        %v778 = vpack.c.bf16 %v726, %v724
        %v779 = vpack.c.bf16 %v729, %v727
        %v780 = vpack.c.bf16 %v730, %v728
        %v781 = vpack.c.bf16 %v733, %v731
        %v782 = vpack.c.bf16 %v734, %v732
        %v783 = vpack.c.bf16 %v737, %v735
        %v784 = vpack.c.bf16 %v738, %v736
        %v785 = vpack.c.bf16 %v741, %v739
        %v786 = vpack.c.bf16 %v742, %v740
        %v787 = vpack.c.bf16 %v745, %v743
        %v788 = vpack.c.bf16 %v746, %v744
        %v789 = vpack.c.bf16 %v749, %v747
        %v790 = vpack.c.bf16 %v750, %v748
        %v791 = vpack.c.bf16 %v753, %v751
        %v792 = vpack.c.bf16 %v754, %v752
        %v793 = vpack.c.bf16 %v757, %v755
        %v794 = vpack.c.bf16 %v758, %v756
        %v795 = vpack.c.bf16 %v761, %v759
        %v796 = vpack.c.bf16 %v762, %v760
        %v797 = vpack.c.bf16 %v765, %v763
        %v798 = vpack.c.bf16 %v766, %v764
        %v799 = vld [vmem:[#allocation8] sm:$0xf]
        %v800 = vld [vmem:[#allocation8 + $0x4] sm:$0xf]
        %v801 = vld [vmem:[#allocation8 + $0x8] sm:$0xf]
        %v802 = vld [vmem:[#allocation8 + $0xc] sm:$0xf]
        %v803 = vld [vmem:[#allocation8 + $0x10] sm:$0xf]
        %v804 = vld [vmem:[#allocation8 + $0x14] sm:$0xf]
        %v805 = vld [vmem:[#allocation8 + $0x18] sm:$0xf]
        %v806 = vld [vmem:[#allocation8 + $0x1c] sm:$0xf]
        %v807 = vld [vmem:[#allocation8 + $0x20] sm:$0xf]
        %v808 = vld [vmem:[#allocation8 + $0x24] sm:$0xf]
        %v809 = vld [vmem:[#allocation8 + $0x28] sm:$0xf]
        %v810 = vld [vmem:[#allocation8 + $0x2c] sm:$0xf]
        %v811 = vld [vmem:[#allocation8 + $0x30] sm:$0xf]
        %v812 = vld [vmem:[#allocation8 + $0x34] sm:$0xf]
        %v813 = vld [vmem:[#allocation8 + $0x38] sm:$0xf]
        %v814 = vld [vmem:[#allocation8 + $0x3c] sm:$0xf]
        %v815 = vld [vmem:[#allocation8 + $0x40] sm:$0xf]
        %v816 = vld [vmem:[#allocation8 + $0x44] sm:$0xf]
        %v817 = vld [vmem:[#allocation8 + $0x48] sm:$0xf]
        %v818 = vld [vmem:[#allocation8 + $0x4c] sm:$0xf]
        %v819 = vld [vmem:[#allocation8 + $0x50] sm:$0xf]
        %v820 = vld [vmem:[#allocation8 + $0x54] sm:$0xf]
        %v821 = vld [vmem:[#allocation8 + $0x58] sm:$0xf]
        %v822 = vld [vmem:[#allocation8 + $0x5c] sm:$0xf]
        %v823 = vld [vmem:[#allocation8 + $0x60] sm:$0xf]
        %v824 = vld [vmem:[#allocation8 + $0x64] sm:$0xf]
        %v825 = vld [vmem:[#allocation8 + $0x68] sm:$0xf]
        %v826 = vld [vmem:[#allocation8 + $0x6c] sm:$0xf]
        %v827 = vld [vmem:[#allocation8 + $0x70] sm:$0xf]
        %v828 = vld [vmem:[#allocation8 + $0x74] sm:$0xf]
        %v829 = vld [vmem:[#allocation8 + $0x78] sm:$0xf]
        %v830 = vld [vmem:[#allocation8 + $0x7c] sm:$0xf]
        %v831 = vld [vmem:[%s4] sm:$0x1]
        %v833 = vperm.slane %v831, 0
        %v867 = vunpack.c.l.b16 %v799
        %v868 = vunpack.c.l.b16 %v800
        %v869 = vunpack.c.l.b16 %v801
        %v870 = vunpack.c.l.b16 %v802
        %v871 = vunpack.c.l.b16 %v803
        %v872 = vunpack.c.l.b16 %v804
        %v873 = vunpack.c.l.b16 %v805
        %v874 = vunpack.c.l.b16 %v806
        %v875 = vunpack.c.l.b16 %v807
        %v876 = vunpack.c.l.b16 %v808
        %v877 = vunpack.c.l.b16 %v809
        %v878 = vunpack.c.l.b16 %v810
        %v879 = vunpack.c.l.b16 %v811
        %v880 = vunpack.c.l.b16 %v812
        %v881 = vunpack.c.l.b16 %v813
        %v882 = vunpack.c.l.b16 %v814
        %v883 = vunpack.c.l.b16 %v815
        %v884 = vunpack.c.l.b16 %v816
        %v885 = vunpack.c.l.b16 %v817
        %v886 = vunpack.c.l.b16 %v818
        %v887 = vunpack.c.l.b16 %v819
        %v888 = vunpack.c.l.b16 %v820
        %v889 = vunpack.c.l.b16 %v821
        %v890 = vunpack.c.l.b16 %v822
        %v891 = vunpack.c.l.b16 %v823
        %v892 = vunpack.c.l.b16 %v824
        %v893 = vunpack.c.l.b16 %v825
        %v894 = vunpack.c.l.b16 %v826
        %v895 = vunpack.c.l.b16 %v827
        %v896 = vunpack.c.l.b16 %v828
        %v897 = vunpack.c.l.b16 %v829
        %v898 = vunpack.c.l.b16 %v830
        %v899 = vpack.c.b16 %v868, %v867
        %v900 = vpack.c.b16 %v870, %v869
        %v901 = vpack.c.b16 %v872, %v871
        %v902 = vpack.c.b16 %v874, %v873
        %v903 = vpack.c.b16 %v876, %v875
        %v904 = vpack.c.b16 %v878, %v877
        %v905 = vpack.c.b16 %v880, %v879
        %v906 = vpack.c.b16 %v882, %v881
        %v907 = vpack.c.b16 %v884, %v883
        %v908 = vpack.c.b16 %v886, %v885
        %v909 = vpack.c.b16 %v888, %v887
        %v910 = vpack.c.b16 %v890, %v889
        %v911 = vpack.c.b16 %v892, %v891
        %v912 = vpack.c.b16 %v894, %v893
        %v913 = vpack.c.b16 %v896, %v895
        %v914 = vpack.c.b16 %v898, %v897
        %931 = vmatpush.bf16.msra.mxu0 %v906
        %932 = vmatpush.bf16.msra.mxu0 %v905
        %933 = vmatpush.bf16.msra.mxu0 %v904
        %934 = vmatpush.bf16.msra.mxu0 %v903
        %935 = vmatpush.bf16.msra.mxu0 %v902
        %936 = vmatpush.bf16.msra.mxu0 %v901
        %937 = vmatpush.bf16.msra.mxu0 %v900
        %938 = vmatpush.bf16.msra.mxu0 %v899
        %939 = vmatmul.bf16.gmra.mxu0 %v767
        %v940 = vpop.f32.mrf.mxu0
        %v941 = vadd.f32 %v833, %v940
        %v942 = vpop.f32.mrf.mxu0
        %v943 = vadd.f32 %v833, %v942
        %944 = vmatmul.bf16.gmra.mxu0 %v769
        %v945 = vpop.f32.mrf.mxu0
        %v946 = vadd.f32 %v833, %v945
        %v947 = vpop.f32.mrf.mxu0
        %v948 = vadd.f32 %v833, %v947
        %949 = vmatmul.bf16.gmra.mxu0 %v771
        %v950 = vpop.f32.mrf.mxu0
        %v951 = vadd.f32 %v833, %v950
        %v952 = vpop.f32.mrf.mxu0
        %v953 = vadd.f32 %v833, %v952
        %954 = vmatmul.bf16.gmra.mxu0 %v773
        %v955 = vpop.f32.mrf.mxu0
        %v956 = vadd.f32 %v833, %v955
        %v957 = vpop.f32.mrf.mxu0
        %v958 = vadd.f32 %v833, %v957
        %959 = vmatmul.bf16.gmra.mxu0 %v775
        %v960 = vpop.f32.mrf.mxu0
        %v961 = vadd.f32 %v833, %v960
        %v962 = vpop.f32.mrf.mxu0
        %v963 = vadd.f32 %v833, %v962
        %964 = vmatmul.bf16.gmra.mxu0 %v777
        %v965 = vpop.f32.mrf.mxu0
        %v966 = vadd.f32 %v833, %v965
        %v967 = vpop.f32.mrf.mxu0
        %v968 = vadd.f32 %v833, %v967
        %969 = vmatmul.bf16.gmra.mxu0 %v779
        %v970 = vpop.f32.mrf.mxu0
        %v971 = vadd.f32 %v833, %v970
        %v972 = vpop.f32.mrf.mxu0
        %v973 = vadd.f32 %v833, %v972
        %974 = vmatmul.bf16.gmra.mxu0 %v781
        %v975 = vpop.f32.mrf.mxu0
        %v976 = vadd.f32 %v833, %v975
        %v977 = vpop.f32.mrf.mxu0
        %v978 = vadd.f32 %v833, %v977
        %979 = vmatmul.bf16.gmra.mxu0 %v783
        %v980 = vpop.f32.mrf.mxu0
        %v981 = vadd.f32 %v833, %v980
        %v982 = vpop.f32.mrf.mxu0
        %v983 = vadd.f32 %v833, %v982
        %984 = vmatmul.bf16.gmra.mxu0 %v785
        %v985 = vpop.f32.mrf.mxu0
        %v986 = vadd.f32 %v833, %v985
        %v987 = vpop.f32.mrf.mxu0
        %v988 = vadd.f32 %v833, %v987
        %989 = vmatmul.bf16.gmra.mxu0 %v787
        %v990 = vpop.f32.mrf.mxu0
        %v991 = vadd.f32 %v833, %v990
        %v992 = vpop.f32.mrf.mxu0
        %v993 = vadd.f32 %v833, %v992
        %994 = vmatmul.bf16.gmra.mxu0 %v789
        %v995 = vpop.f32.mrf.mxu0
        %v996 = vadd.f32 %v833, %v995
        %v997 = vpop.f32.mrf.mxu0
        %v998 = vadd.f32 %v833, %v997
        %999 = vmatmul.bf16.gmra.mxu0 %v791
        %v1000 = vpop.f32.mrf.mxu0
        %v1001 = vadd.f32 %v833, %v1000
        %v1002 = vpop.f32.mrf.mxu0
        %v1003 = vadd.f32 %v833, %v1002
        %1004 = vmatmul.bf16.gmra.mxu0 %v793
        %v1005 = vpop.f32.mrf.mxu0
        %v1006 = vadd.f32 %v833, %v1005
        %v1007 = vpop.f32.mrf.mxu0
        %v1008 = vadd.f32 %v833, %v1007
        %1009 = vmatmul.bf16.gmra.mxu0 %v795
        %v1010 = vpop.f32.mrf.mxu0
        %v1011 = vadd.f32 %v833, %v1010
        %v1012 = vpop.f32.mrf.mxu0
        %v1013 = vadd.f32 %v833, %v1012
        %1014 = vmatmul.bf16.gmra.mxu0 %v797
        %v1015 = vpop.f32.mrf.mxu0
        %v1016 = vadd.f32 %v833, %v1015
        %v1017 = vpop.f32.mrf.mxu0
        %v1018 = vadd.f32 %v833, %v1017
        %1019 = vdwg.mxu0
        %1020 = vmatpush.bf16.msra.mxu0 %v914
        %1021 = vmatpush.bf16.msra.mxu0 %v913
        %1022 = vmatpush.bf16.msra.mxu0 %v912
        %1023 = vmatpush.bf16.msra.mxu0 %v911
        %1024 = vmatpush.bf16.msra.mxu0 %v910
        %1025 = vmatpush.bf16.msra.mxu0 %v909
        %1026 = vmatpush.bf16.msra.mxu0 %v908
        %1027 = vmatpush.bf16.msra.mxu0 %v907
        %1028 = vmatmul.bf16.gmra.mxu0 %v768
        %v1029 = vpop.f32.mrf.mxu0
        %v1030 = vadd.f32 %v941, %v1029
        %v1031 = vpop.f32.mrf.mxu0
        %v1032 = vadd.f32 %v943, %v1031
        %1033 = vmatmul.bf16.gmra.mxu0 %v770
        %v1034 = vpop.f32.mrf.mxu0
        %v1035 = vadd.f32 %v946, %v1034
        %v1036 = vpop.f32.mrf.mxu0
        %v1037 = vadd.f32 %v948, %v1036
        %1038 = vmatmul.bf16.gmra.mxu0 %v772
        %v1039 = vpop.f32.mrf.mxu0
        %v1040 = vadd.f32 %v951, %v1039
        %v1041 = vpop.f32.mrf.mxu0
        %v1042 = vadd.f32 %v953, %v1041
        %1043 = vmatmul.bf16.gmra.mxu0 %v774
        %v1044 = vpop.f32.mrf.mxu0
        %v1045 = vadd.f32 %v956, %v1044
        %v1046 = vpop.f32.mrf.mxu0
        %v1047 = vadd.f32 %v958, %v1046
        %1048 = vmatmul.bf16.gmra.mxu0 %v776
        %v1049 = vpop.f32.mrf.mxu0
        %v1050 = vadd.f32 %v961, %v1049
        %v1051 = vpop.f32.mrf.mxu0
        %v1052 = vadd.f32 %v963, %v1051
        %1053 = vmatmul.bf16.gmra.mxu0 %v778
        %v1054 = vpop.f32.mrf.mxu0
        %v1055 = vadd.f32 %v966, %v1054
        %v1056 = vpop.f32.mrf.mxu0
        %v1057 = vadd.f32 %v968, %v1056
        %1058 = vmatmul.bf16.gmra.mxu0 %v780
        %v1059 = vpop.f32.mrf.mxu0
        %v1060 = vadd.f32 %v971, %v1059
        %v1061 = vpop.f32.mrf.mxu0
        %v1062 = vadd.f32 %v973, %v1061
        %1063 = vmatmul.bf16.gmra.mxu0 %v782
        %v1064 = vpop.f32.mrf.mxu0
        %v1065 = vadd.f32 %v976, %v1064
        %v1066 = vpop.f32.mrf.mxu0
        %v1067 = vadd.f32 %v978, %v1066
        %1068 = vmatmul.bf16.gmra.mxu0 %v784
        %v1069 = vpop.f32.mrf.mxu0
        %v1070 = vadd.f32 %v981, %v1069
        %v1071 = vpop.f32.mrf.mxu0
        %v1072 = vadd.f32 %v983, %v1071
        %1073 = vmatmul.bf16.gmra.mxu0 %v786
        %v1074 = vpop.f32.mrf.mxu0
        %v1075 = vadd.f32 %v986, %v1074
        %v1076 = vpop.f32.mrf.mxu0
        %v1077 = vadd.f32 %v988, %v1076
        %1078 = vmatmul.bf16.gmra.mxu0 %v788
        %v1079 = vpop.f32.mrf.mxu0
        %v1080 = vadd.f32 %v991, %v1079
        %v1081 = vpop.f32.mrf.mxu0
        %v1082 = vadd.f32 %v993, %v1081
        %1083 = vmatmul.bf16.gmra.mxu0 %v790
        %v1084 = vpop.f32.mrf.mxu0
        %v1085 = vadd.f32 %v996, %v1084
        %v1086 = vpop.f32.mrf.mxu0
        %v1087 = vadd.f32 %v998, %v1086
        %1088 = vmatmul.bf16.gmra.mxu0 %v792
        %v1089 = vpop.f32.mrf.mxu0
        %v1090 = vadd.f32 %v1001, %v1089
        %v1091 = vpop.f32.mrf.mxu0
        %v1092 = vadd.f32 %v1003, %v1091
        %1093 = vmatmul.bf16.gmra.mxu0 %v794
        %v1094 = vpop.f32.mrf.mxu0
        %v1095 = vadd.f32 %v1006, %v1094
        %v1096 = vpop.f32.mrf.mxu0
        %v1097 = vadd.f32 %v1008, %v1096
        %1098 = vmatmul.bf16.gmra.mxu0 %v796
        %v1099 = vpop.f32.mrf.mxu0
        %v1100 = vadd.f32 %v1011, %v1099
        %v1101 = vpop.f32.mrf.mxu0
        %v1102 = vadd.f32 %v1013, %v1101
        %1103 = vmatmul.bf16.gmra.mxu0 %v798
        %v1104 = vpop.f32.mrf.mxu0
        %v1105 = vadd.f32 %v1016, %v1104
        %v1106 = vpop.f32.mrf.mxu0
        %v1107 = vadd.f32 %v1018, %v1106
        %1108 = vdwg.mxu0
        %v1109 = vpack.c.bf16 %v1030, %v1030
        %v1110 = vpack.c.bf16 %v1032, %v1032
        %v1111 = vpack.c.bf16 %v1035, %v1035
        %v1112 = vpack.c.bf16 %v1037, %v1037
        %v1113 = vpack.c.bf16 %v1040, %v1040
        %v1114 = vpack.c.bf16 %v1042, %v1042
        %v1115 = vpack.c.bf16 %v1045, %v1045
        %v1116 = vpack.c.bf16 %v1047, %v1047
        %v1117 = vpack.c.bf16 %v1050, %v1050
        %v1118 = vpack.c.bf16 %v1052, %v1052
        %v1119 = vpack.c.bf16 %v1055, %v1055
        %v1120 = vpack.c.bf16 %v1057, %v1057
        %v1121 = vpack.c.bf16 %v1060, %v1060
        %v1122 = vpack.c.bf16 %v1062, %v1062
        %v1123 = vpack.c.bf16 %v1065, %v1065
        %v1124 = vpack.c.bf16 %v1067, %v1067
        %v1125 = vpack.c.bf16 %v1070, %v1070
        %v1126 = vpack.c.bf16 %v1072, %v1072
        %v1127 = vpack.c.bf16 %v1075, %v1075
        %v1128 = vpack.c.bf16 %v1077, %v1077
        %v1129 = vpack.c.bf16 %v1080, %v1080
        %v1130 = vpack.c.bf16 %v1082, %v1082
        %v1131 = vpack.c.bf16 %v1085, %v1085
        %v1132 = vpack.c.bf16 %v1087, %v1087
        %v1133 = vpack.c.bf16 %v1090, %v1090
        %v1134 = vpack.c.bf16 %v1092, %v1092
        %v1135 = vpack.c.bf16 %v1095, %v1095
        %v1136 = vpack.c.bf16 %v1097, %v1097
        %v1137 = vpack.c.bf16 %v1100, %v1100
        %v1138 = vpack.c.bf16 %v1102, %v1102
        %v1139 = vpack.c.bf16 %v1105, %v1105
        %v1140 = vpack.c.bf16 %v1107, %v1107
        %1141 = vst [vmem:[%s292] sm:$0xf] %v1109
        %1142 = vst [vmem:[%s292 + $0x4] sm:$0xf] %v1110
        %1143 = vst [vmem:[%s292 + $0x8] sm:$0xf] %v1111
        %1144 = vst [vmem:[%s292 + $0xc] sm:$0xf] %v1112
        %1145 = vst [vmem:[%s292 + $0x10] sm:$0xf] %v1113
        %1146 = vst [vmem:[%s292 + $0x14] sm:$0xf] %v1114
        %1147 = vst [vmem:[%s292 + $0x18] sm:$0xf] %v1115
        %1148 = vst [vmem:[%s292 + $0x1c] sm:$0xf] %v1116
        %1149 = vst [vmem:[%s292 + $0x20] sm:$0xf] %v1117
        %1150 = vst [vmem:[%s292 + $0x24] sm:$0xf] %v1118
        %1151 = vst [vmem:[%s292 + $0x28] sm:$0xf] %v1119
        %1152 = vst [vmem:[%s292 + $0x2c] sm:$0xf] %v1120
        %1153 = vst [vmem:[%s292 + $0x30] sm:$0xf] %v1121
        %1154 = vst [vmem:[%s292 + $0x34] sm:$0xf] %v1122
        %1155 = vst [vmem:[%s292 + $0x38] sm:$0xf] %v1123
        %1156 = vst [vmem:[%s292 + $0x3c] sm:$0xf] %v1124
        %1157 = vst [vmem:[%s292 + $0x40] sm:$0xf] %v1125
        %1158 = vst [vmem:[%s292 + $0x44] sm:$0xf] %v1126
        %1159 = vst [vmem:[%s292 + $0x48] sm:$0xf] %v1127
        %1160 = vst [vmem:[%s292 + $0x4c] sm:$0xf] %v1128
        %1161 = vst [vmem:[%s292 + $0x50] sm:$0xf] %v1129
        %1162 = vst [vmem:[%s292 + $0x54] sm:$0xf] %v1130
        %1163 = vst [vmem:[%s292 + $0x58] sm:$0xf] %v1131
        %1164 = vst [vmem:[%s292 + $0x5c] sm:$0xf] %v1132
        %1165 = vst [vmem:[%s292 + $0x60] sm:$0xf] %v1133
        %1166 = vst [vmem:[%s292 + $0x64] sm:$0xf] %v1134
        %1167 = vst [vmem:[%s292 + $0x68] sm:$0xf] %v1135
        %1168 = vst [vmem:[%s292 + $0x6c] sm:$0xf] %v1136
        %1169 = vst [vmem:[%s292 + $0x70] sm:$0xf] %v1137
        %1170 = vst [vmem:[%s292 + $0x74] sm:$0xf] %v1138
        %1171 = vst [vmem:[%s292 + $0x78] sm:$0xf] %v1139
        %1172 = vst [vmem:[%s292 + $0x7c] sm:$0xf] %v1140
        %s1173 = sand.u32 %s142, 1
        %s1174 = scalar_lea.sflag [#allocation4], %s1173
        %s1175 = sand.u32 %s142, 1
        %s1176 = smul.addr %s1175, 128
        %s1177 = scalar_lea.vmem [#allocation10], %s1176
        // Predicated region
        $region57: #{tpu_custom_call.1} parent=39 // pred_check
          %p1178 = pneg %p152
        $region58: #{tpu_custom_call.1} parent=39 // pred_check_branch
          %1180 = sbr.rel (%p1178) target = $region60
        $region59: #{tpu_custom_call.1} parent=39 // pred_region
          %s1181 = smul.u32 32, %s24
          %1183 = vsyncadd %s1174, 0
          %s1184 = smul.addr %s1181, 4
          %s1185 = scalar_lea.hbm %s5, %s1184
          %s1186 = sshll.u32 %s1177, 4
          %s1187 = int_to_ptr.vmem [resolvable:$true] %s1186
          %s1188 = sshll.u32 %s1185, 4
          %s1189 = int_to_ptr.hbm [resolvable:$true] %s1188
          %1194 = dma.vmem_to_hbm [thread:$0]  %s1187, 2048, %s1189, %s1174, 64, 64, 4
        $region60: #{tpu_custom_call.1} parent=39 // pred_fallthru
          _
      $region40: #{tpu_custom_call.1} parent=5 // pred_fallthru
        _
      %p1195 = scmp.le.s32.totalorder 2, %s19
      // Predicated region
      $region61: #{tpu_custom_call.1} parent=5 // pred_check
        %p1196 = pneg %p1195
      $region62: #{tpu_custom_call.1} parent=5 // pred_check_branch
        %1198 = sbr.rel (%p1196) target = $region64
      $region63: #{tpu_custom_call.1} parent=5 // pred_region
        %s1199 = ssub.s32 %s19, 2
        // Predicated region
        $region65: #{tpu_custom_call.1} parent=63 // pred_check
          %p1200 = pneg %p158
        $region66: #{tpu_custom_call.1} parent=63 // pred_check_branch
          %1202 = sbr.rel (%p1200) target = $region68
        $region67: #{tpu_custom_call.1} parent=63 // pred_region
          %s1203 = sand.u32 %s143, 1
          %s1204 = scalar_lea.sflag [#allocation4], %s1203
          %s1205 = sand.u32 %s143, 1
          %s1206 = smul.addr %s1205, 128
          %s1207 = scalar_lea.vmem [#allocation10], %s1206
          %1209 = dma.done %s1204, 2048
        $region68: #{tpu_custom_call.1} parent=63 // pred_fallthru
          _
      $region64: #{tpu_custom_call.1} parent=5 // pred_fallthru
        _
    $region6: #{tpu_custom_call.1} parent=1 // loop_footer
      %s23 = sadd.s32 1, %s19
    $region7: #{tpu_custom_call.1} parent=1 // loop_footer_branch
      %18 = sbr.rel target = $region3
    $region8: #{tpu_custom_call.1} parent=1 // loop_exit
      _
    %1210 = vsyncpa [#allocation3], 1
    %s1211 = scalar_lea.sflag [#allocation3], 1
    %1212 = vsyncpa %s1211, 1
    %1213 = vsyncpa [#allocation6], 1
    %1214 = vsyncpa [#allocation9], 1
    %1215 = vsyncpa [#allocation4], 1
    %s1216 = scalar_lea.sflag [#allocation4], 1
    %1217 = vsyncpa %s1216, 1

</llo_original>
